<compile_context>
chip_gen: v7x
topology: tpu7x:2x2x1
jax: 0.10.0
libtpu: 0.0.40
codegen_flags: <defaults>
</compile_context>

<pallas_src>
import jax
import jax.numpy as jnp
from jax.experimental import pallas as pl
from jax.experimental.pallas import tpu as pltpu

_PAD_COORD = 1e18  # padded target rows get a huge coordinate -> never selected


def _round_up(x, m):
    return ((x + m - 1) // m) * m


# ----------------------------------------------------------------------------
# Pallas kernel: brute-force nearest neighbor (squared L2) + argmin + gather
# ----------------------------------------------------------------------------
def _nn_kernel(src_ref, tgt_ref, min_d_ref, idx_ref, corr_ref,
               rmin_ref, ridx_ref, px_ref, py_ref, pz_ref):
    k = pl.program_id(1)           # target-tile index (innermost, "arbitrary")
    n_tt = pl.num_programs(1)

    src = src_ref[...]             # (3, TM)  source points, lane-major
    tgt = tgt_ref[...]             # (TK, 3)  target tile, one point / sublane
    tm = src.shape[1]
    tk = tgt.shape[0]

    @pl.when(k == 0)
    def _():
        rmin_ref[...] = jnp.full_like(rmin_ref, jnp.inf)
        ridx_ref[...] = jnp.zeros_like(ridx_ref)
        px_ref[...] = jnp.zeros_like(px_ref)
        py_ref[...] = jnp.zeros_like(py_ref)
        pz_ref[...] = jnp.zeros_like(pz_ref)

    run_min = rmin_ref[...]        # (8, TM) running min dist (per sublane residue)
    run_idx = ridx_ref[...]        # (8, TM) running argmin (global target index)
    px = px_ref[...]               # (8, TM) running matched-point coords
    py = py_ref[...]
    pz = pz_ref[...]

    # Loop-invariant broadcasts hoisted out of the group loop.
    sx = jnp.broadcast_to(src[0:1, :], (8, tm))
    sy = jnp.broadcast_to(src[1:2, :], (8, tm))
    sz = jnp.broadcast_to(src[2:3, :], (8, tm))
    gbase = jax.lax.broadcasted_iota(jnp.int32, (8, tm), 0) + k * tk

    # One pass over the target tile, 8 target points (one vreg row-group) at a
    # time: dist + running min/argmin/point update is pure VPU work.
    for g in range(tk // 8):
        tg = tgt[g * 8:(g + 1) * 8, :]          # (8, 3)
        tx = tg[:, 0:1]
        ty = tg[:, 1:2]
        tz = tg[:, 2:3]
        d = tx - sx
        dist = d * d                            # no zeros-init memset
        d = ty - sy
        dist = dist + d * d
        d = tz - sz
        dist = dist + d * d                     # (8, TM)
        better = dist < run_min                 # strict '<' -> first-index ties
        run_min = jnp.where(better, dist, run_min)
        run_idx = jnp.where(better, gbase + g * 8, run_idx)
        px = jnp.where(better, tx, px)
        py = jnp.where(better, ty, py)
        pz = jnp.where(better, tz, pz)

    rmin_ref[...] = run_min
    ridx_ref[...] = run_idx
    px_ref[...] = px
    py_ref[...] = py
    pz_ref[...] = pz

    # Finalize: reduce the 8 sublane accumulators and emit lane-dense outputs.
    @pl.when(k == n_tt - 1)
    def _():
        fmin = jnp.min(run_min, axis=0, keepdims=True)                # (1, TM)
        sentinel = n_tt * tk                                          # > any idx
        fidx = jnp.min(jnp.where(run_min == fmin, run_idx, sentinel),
                       axis=0, keepdims=True)                         # (1, TM)
        # Each sublane only ever holds indices with (idx mod 8)==row, so fidx
        # matches exactly one sublane per column.
        sel = run_idx == fidx
        cx = jnp.sum(jnp.where(sel, px, 0.0), axis=0, keepdims=True)
        cy = jnp.sum(jnp.where(sel, py, 0.0), axis=0, keepdims=True)
        cz = jnp.sum(jnp.where(sel, pz, 0.0), axis=0, keepdims=True)
        min_d_ref[...] = fmin
        idx_ref[...] = fidx
        corr_ref[...] = jnp.concatenate([cx, cy, cz], axis=0)         # (3, TM)


def find_nearest_neighbor(source, target, tile_m=256, tile_k=512):
    """source: (N1, 3), target: (N2, 3) ->
       (min_sq_dist (N1,), argmin (N1,) int32, matched target point (N1, 3))"""
    n1, d = source.shape
    n2, d2 = target.shape
    assert d == 3 and d2 == 3

    tm = min(tile_m, _round_up(n1, 128))   # multiple of 128 (lane-dense)
    tk = min(tile_k, _round_up(n2, 8))     # multiple of 8 (sublane groups)
    n1p = _round_up(n1, tm)
    n2p = _round_up(n2, tk)

    # Source transposed so the source index runs along lanes; pad with zeros
    # (padded rows are sliced away afterwards). Target padded with a huge
    # coordinate so padded points can never be the nearest neighbor.
    src_t = jnp.zeros((3, n1p), source.dtype).at[:, :n1].set(source.T)
    tgt_p = jnp.full((n2p, 3), _PAD_COORD, target.dtype).at[:n2, :].set(target)

    grid = (n1p // tm, n2p // tk)          # (source tiles, target tiles)
    min_d, idx, corr = pl.pallas_call(
        _nn_kernel,
        out_shape=(jax.ShapeDtypeStruct((1, n1p), jnp.float32),
                   jax.ShapeDtypeStruct((1, n1p), jnp.int32),
                   jax.ShapeDtypeStruct((3, n1p), jnp.float32)),
        grid=grid,
        in_specs=[pl.BlockSpec((3, tm), lambda i, k: (0, i)),
                  pl.BlockSpec((tk, 3), lambda i, k: (k, 0))],
        out_specs=(pl.BlockSpec((1, tm), lambda i, k: (0, i)),
                   pl.BlockSpec((1, tm), lambda i, k: (0, i)),
                   pl.BlockSpec((3, tm), lambda i, k: (0, i))),
        scratch_shapes=[pltpu.VMEM((8, tm), jnp.float32),   # running min
                        pltpu.VMEM((8, tm), jnp.int32),     # running argmin
                        pltpu.VMEM((8, tm), jnp.float32),   # matched x
                        pltpu.VMEM((8, tm), jnp.float32),   # matched y
                        pltpu.VMEM((8, tm), jnp.float32)],  # matched z
        compiler_params=pltpu.CompilerParams(
            dimension_semantics=("parallel", "arbitrary"),  # megacore on src
            vmem_limit_bytes=32 * 1024 * 1024),             # tiny footprint; fits v7x
    )(src_t, tgt_p)
    return min_d[0, :n1], idx[0, :n1], corr[:, :n1].T


# ----------------------------------------------------------------------------
# Small JAX glue: weighted Umeyama (rigid, no scale), point transform, ICP loop
# ----------------------------------------------------------------------------
def _weighted_umeyama(src, dst, w):
    """Rigid (rotation + translation) alignment src -> dst with binary weights.

    Equivalent to umeyama(src[mask], dst[mask], estimate_scale=False) but with
    static shapes (torch version filters rows, which is dynamic-shape)."""
    wsum = jnp.sum(w) + 1e-12
    mu_src = jnp.sum(src * w[:, None], axis=0) / wsum
    mu_dst = jnp.sum(dst * w[:, None], axis=0) / wsum
    src_c = (src - mu_src) * w[:, None]
    dst_c = dst - mu_dst
    cov = (dst_c.T @ src_c) / wsum                     # (3, 3)
    u, s, vh = jnp.linalg.svd(cov)
    sign = jnp.sign(jnp.linalg.det(u) * jnp.linalg.det(vh))
    diag = jnp.array([1.0, 1.0, 0.0], src.dtype) + sign * jnp.array(
        [0.0, 0.0, 1.0], src.dtype)
    rot = (u * diag[None, :]) @ vh
    t = mu_dst - rot @ mu_src
    tmat = jnp.eye(4, dtype=src.dtype)
    tmat = tmat.at[:3, :3].set(rot).at[:3, 3].set(t)
    return tmat


def _transform(points, tmat):
    # == cat([points, 1]) @ tmat.T, then take first 3 columns
    return points @ tmat[:3, :3].T + tmat[:3, 3]


class ICPMatcher:
    def __init__(self, max_nearest_distance=0.2, max_iteration=100):
        self.threshold = max_nearest_distance ** 2
        self.max_iteration = max_iteration

    def __call__(self, source, target):
        assert source.ndim == 2 and target.ndim == 2
        assert source.shape[1] == target.shape[1] == 3
        n1 = source.shape[0]

        def body(state):
            it, src, total_t, last_idx, done = state
            # corr is the matched target point, gathered inside the kernel.
            min_d, idx, corr = find_nearest_neighbor(src, target)
            mask = min_d < self.threshold
            w = mask.astype(src.dtype)
            tmat = _weighted_umeyama(src, corr, w)
            # TODO(synk): torch raises ValueError for < 4 inliers; that
            # data-dependent exception cannot be raised inside a traced loop,
            # so we freeze the update to identity instead.
            tmat = jnp.where(jnp.sum(mask) >= 4, tmat,
                             jnp.eye(4, dtype=src.dtype))
            src_new = _transform(src, tmat)
            total_t_new = tmat @ total_t
            cur_idx = jnp.where(mask, idx, -1)
            done_new = jnp.all(cur_idx == last_idx)  # correspondences unchanged
            return it + 1, src_new, total_t_new, cur_idx, done_new

        def cond(state):
            it, _, _, _, done = state
            return jnp.logical_and(it < self.max_iteration,
                                   jnp.logical_not(done))

        init = (jnp.int32(0),
                source,
                jnp.eye(4, dtype=source.dtype),
                jnp.full((n1,), -2, jnp.int32),
                jnp.bool_(False))
        final = jax.lax.while_loop(cond, body, init)
        return final[2]


# ----------------------------------------------------------------------------
if __name__ == "__main__":
    key = jax.random.PRNGKey(0)
    n_src, n_tgt = 64, 64

    target = jax.random.normal(key, (n_tgt, 3), jnp.float32) * 0.5

    # source = target under a small known rigid transform (so NN pairs are
    # within the 0.2 max nearest distance)
    ang = 0.05
    c, s = jnp.cos(ang), jnp.sin(ang)
    r_true = jnp.array([[c, -s, 0.0], [s, c, 0.0], [0.0, 0.0, 1.0]],
                       jnp.float32)
    t_true = jnp.array([0.03, -0.02, 0.01], jnp.float32)
    source = target @ r_true.T + t_true

    # quick correctness check of the NN kernel against a pure-jnp reference
    md, mi, mc = find_nearest_neighbor(source, target)
    ref_d = jnp.sum((source[:, None, :] - target[None, :, :]) ** 2, axis=-1)
    assert jnp.allclose(md, jnp.min(ref_d, axis=1), rtol=1e-5, atol=1e-6)
    assert jnp.array_equal(mi, jnp.argmin(ref_d, axis=1).astype(jnp.int32))
    assert jnp.allclose(mc, target[mi])

    matcher = ICPMatcher(max_nearest_distance=0.2, max_iteration=50)
    total_transf = jax.jit(matcher)(source, target)
    jax.block_until_ready(total_transf)

    assert total_transf.shape == (4, 4)
    assert total_transf.dtype == jnp.float32
    print("KERNEL_OK")
</pallas_src>

<mosaic_0001>
module attributes {stable_mosaic.version = 11 : i64} {
  func.func @_nn_kernel(%arg0: i32, %arg1: i32, %arg2: memref<3x128xf32, #tpu.memory_space<vmem>>, %arg3: memref<64x3xf32, #tpu.memory_space<vmem>>, %arg4: memref<1x128xf32, #tpu.memory_space<vmem>>, %arg5: memref<1x128xi32, #tpu.memory_space<vmem>>, %arg6: memref<3x128xf32, #tpu.memory_space<vmem>>, %arg7: memref<8x128xf32, #tpu.memory_space<vmem>>, %arg8: memref<8x128xi32, #tpu.memory_space<vmem>>, %arg9: memref<8x128xf32, #tpu.memory_space<vmem>>, %arg10: memref<8x128xf32, #tpu.memory_space<vmem>>, %arg11: memref<8x128xf32, #tpu.memory_space<vmem>>) attributes {dimension_semantics = [#tpu.dimension_semantics<parallel>, #tpu.dimension_semantics<arbitrary>], iteration_bounds = array<i64: 1, 1>, scalar_prefetch = 0 : i64, scratch_operands = 5 : i64, tpu.core_type = #tpu.core_type<tc>, window_params = [{transform_indices = @transform_0, window_bounds = array<i64: 3, 128>}, {transform_indices = @transform_1, window_bounds = array<i64: 64, 3>}, {transform_indices = @transform_2, window_bounds = array<i64: 1, 128>}, {transform_indices = @transform_3, window_bounds = array<i64: 1, 128>}, {transform_indices = @transform_4, window_bounds = array<i64: 3, 128>}]} {
    %c0 = arith.constant 0 : index
    %c0_0 = arith.constant 0 : index
    %0 = vector.load %arg2[%c0, %c0_0] : memref<3x128xf32, #tpu.memory_space<vmem>>, vector<3x128xf32>
    %c0_1 = arith.constant 0 : index
    %c0_2 = arith.constant 0 : index
    %1 = vector.load %arg3[%c0_1, %c0_2] : memref<64x3xf32, #tpu.memory_space<vmem>>, vector<64x3xf32>
    %c0_i32 = arith.constant 0 : i32
    %2 = arith.cmpi eq, %arg1, %c0_i32 : i32
    %3 = arith.extui %2 : i1 to i32
    %c0_i32_3 = arith.constant 0 : i32
    %4 = arith.cmpi ne, %3, %c0_i32_3 : i32
    scf.if %4 {
      %cst = arith.constant 0x7F800000 : f32
      %263 = vector.broadcast %cst : f32 to vector<8x128xf32>
      %c0_27 = arith.constant 0 : index
      %c0_28 = arith.constant 0 : index
      %264 = vector.load %arg7[%c0_27, %c0_28] : memref<8x128xf32, #tpu.memory_space<vmem>>, vector<8x128xf32>
      tpu.vector_store %arg7[%c0_27, %c0_28], %263 {strides = array<i32>} : memref<8x128xf32, #tpu.memory_space<vmem>>, vector<8x128xf32>,
      %c0_i32_29 = arith.constant 0 : i32
      %265 = vector.broadcast %c0_i32_29 : i32 to vector<8x128xi32>
      %c0_30 = arith.constant 0 : index
      %c0_31 = arith.constant 0 : index
      %266 = vector.load %arg8[%c0_30, %c0_31] : memref<8x128xi32, #tpu.memory_space<vmem>>, vector<8x128xi32>
      tpu.vector_store %arg8[%c0_30, %c0_31], %265 {strides = array<i32>} : memref<8x128xi32, #tpu.memory_space<vmem>>, vector<8x128xi32>,
      %cst_32 = arith.constant 0.000000e+00 : f32
      %267 = vector.broadcast %cst_32 : f32 to vector<8x128xf32>
      %c0_33 = arith.constant 0 : index
      %c0_34 = arith.constant 0 : index
      %268 = vector.load %arg9[%c0_33, %c0_34] : memref<8x128xf32, #tpu.memory_space<vmem>>, vector<8x128xf32>
      tpu.vector_store %arg9[%c0_33, %c0_34], %267 {strides = array<i32>} : memref<8x128xf32, #tpu.memory_space<vmem>>, vector<8x128xf32>,
      %cst_35 = arith.constant 0.000000e+00 : f32
      %269 = vector.broadcast %cst_35 : f32 to vector<8x128xf32>
      %c0_36 = arith.constant 0 : index
      %c0_37 = arith.constant 0 : index
      %270 = vector.load %arg10[%c0_36, %c0_37] : memref<8x128xf32, #tpu.memory_space<vmem>>, vector<8x128xf32>
      tpu.vector_store %arg10[%c0_36, %c0_37], %269 {strides = array<i32>} : memref<8x128xf32, #tpu.memory_space<vmem>>, vector<8x128xf32>,
      %cst_38 = arith.constant 0.000000e+00 : f32
      %271 = vector.broadcast %cst_38 : f32 to vector<8x128xf32>
      %c0_39 = arith.constant 0 : index
      %c0_40 = arith.constant 0 : index
      %272 = vector.load %arg11[%c0_39, %c0_40] : memref<8x128xf32, #tpu.memory_space<vmem>>, vector<8x128xf32>
      tpu.vector_store %arg11[%c0_39, %c0_40], %271 {strides = array<i32>} : memref<8x128xf32, #tpu.memory_space<vmem>>, vector<8x128xf32>,
    } else {
    }
    %c0_4 = arith.constant 0 : index
    %c0_5 = arith.constant 0 : index
    %5 = vector.load %arg7[%c0_4, %c0_5] : memref<8x128xf32, #tpu.memory_space<vmem>>, vector<8x128xf32>
    %c0_6 = arith.constant 0 : index
    %c0_7 = arith.constant 0 : index
    %6 = vector.load %arg8[%c0_6, %c0_7] : memref<8x128xi32, #tpu.memory_space<vmem>>, vector<8x128xi32>
    %c0_8 = arith.constant 0 : index
    %c0_9 = arith.constant 0 : index
    %7 = vector.load %arg9[%c0_8, %c0_9] : memref<8x128xf32, #tpu.memory_space<vmem>>, vector<8x128xf32>
    %c0_10 = arith.constant 0 : index
    %c0_11 = arith.constant 0 : index
    %8 = vector.load %arg10[%c0_10, %c0_11] : memref<8x128xf32, #tpu.memory_space<vmem>>, vector<8x128xf32>
    %c0_12 = arith.constant 0 : index
    %c0_13 = arith.constant 0 : index
    %9 = vector.load %arg11[%c0_12, %c0_13] : memref<8x128xf32, #tpu.memory_space<vmem>>, vector<8x128xf32>
    %10 = vector.extract_strided_slice %0 {offsets = [0, 0], sizes = [1, 128], strides = [1, 1]} : vector<3x128xf32> to vector<1x128xf32>
    %11 = vector.shape_cast %10 : vector<1x128xf32> to vector<1x128xf32>
    %12 = vector.broadcast %11 : vector<1x128xf32> to vector<8x128xf32>
    %13 = vector.extract_strided_slice %0 {offsets = [1, 0], sizes = [1, 128], strides = [1, 1]} : vector<3x128xf32> to vector<1x128xf32>
    %14 = vector.shape_cast %13 : vector<1x128xf32> to vector<1x128xf32>
    %15 = vector.broadcast %14 : vector<1x128xf32> to vector<8x128xf32>
    %16 = vector.extract_strided_slice %0 {offsets = [2, 0], sizes = [1, 128], strides = [1, 1]} : vector<3x128xf32> to vector<1x128xf32>
    %17 = vector.shape_cast %16 : vector<1x128xf32> to vector<1x128xf32>
    %18 = vector.broadcast %17 : vector<1x128xf32> to vector<8x128xf32>
    %19 = tpu.iota {dimensions = array<i32: 0>} : vector<8x128xi32>
    %c64_i32 = arith.constant 64 : i32
    %20 = arith.muli %arg1, %c64_i32 : i32
    %21 = vector.broadcast %20 : i32 to vector<8x128xi32>
    %22 = arith.addi %19, %21 : vector<8x128xi32>
    %23 = vector.extract_strided_slice %1 {offsets = [0, 0], sizes = [8, 3], strides = [1, 1]} : vector<64x3xf32> to vector<8x3xf32>
    %24 = vector.extract_strided_slice %23 {offsets = [0, 0], sizes = [8, 1], strides = [1, 1]} : vector<8x3xf32> to vector<8x1xf32>
    %25 = vector.extract_strided_slice %23 {offsets = [0, 1], sizes = [8, 1], strides = [1, 1]} : vector<8x3xf32> to vector<8x1xf32>
    %26 = vector.extract_strided_slice %23 {offsets = [0, 2], sizes = [8, 1], strides = [1, 1]} : vector<8x3xf32> to vector<8x1xf32>
    %27 = vector.broadcast %24 : vector<8x1xf32> to vector<8x128xf32>
    %28 = arith.subf %27, %12 : vector<8x128xf32>
    %29 = arith.mulf %28, %28 : vector<8x128xf32>
    %30 = vector.broadcast %25 : vector<8x1xf32> to vector<8x128xf32>
    %31 = arith.subf %30, %15 : vector<8x128xf32>
    %32 = arith.mulf %31, %31 : vector<8x128xf32>
    %33 = arith.addf %29, %32 : vector<8x128xf32>
    %34 = vector.broadcast %26 : vector<8x1xf32> to vector<8x128xf32>
    %35 = arith.subf %34, %18 : vector<8x128xf32>
    %36 = arith.mulf %35, %35 : vector<8x128xf32>
    %37 = arith.addf %33, %36 : vector<8x128xf32>
    %38 = arith.cmpf olt, %37, %5 : vector<8x128xf32>
    %39 = arith.select %38, %37, %5 : vector<8x128xi1>, vector<8x128xf32>
    %c0_i32_14 = arith.constant 0 : i32
    %40 = vector.broadcast %c0_i32_14 : i32 to vector<8x128xi32>
    %41 = arith.addi %22, %40 : vector<8x128xi32>
    %42 = arith.select %38, %41, %6 : vector<8x128xi1>, vector<8x128xi32>
    %43 = vector.shape_cast %24 : vector<8x1xf32> to vector<8x1xf32>
    %44 = vector.broadcast %43 : vector<8x1xf32> to vector<8x128xf32>
    %45 = arith.select %38, %44, %7 : vector<8x128xi1>, vector<8x128xf32>
    %46 = vector.shape_cast %25 : vector<8x1xf32> to vector<8x1xf32>
    %47 = vector.broadcast %46 : vector<8x1xf32> to vector<8x128xf32>
    %48 = arith.select %38, %47, %8 : vector<8x128xi1>, vector<8x128xf32>
    %49 = vector.shape_cast %26 : vector<8x1xf32> to vector<8x1xf32>
    %50 = vector.broadcast %49 : vector<8x1xf32> to vector<8x128xf32>
    %51 = arith.select %38, %50, %9 : vector<8x128xi1>, vector<8x128xf32>
    %52 = vector.extract_strided_slice %1 {offsets = [8, 0], sizes = [8, 3], strides = [1, 1]} : vector<64x3xf32> to vector<8x3xf32>
    %53 = vector.extract_strided_slice %52 {offsets = [0, 0], sizes = [8, 1], strides = [1, 1]} : vector<8x3xf32> to vector<8x1xf32>
    %54 = vector.extract_strided_slice %52 {offsets = [0, 1], sizes = [8, 1], strides = [1, 1]} : vector<8x3xf32> to vector<8x1xf32>
    %55 = vector.extract_strided_slice %52 {offsets = [0, 2], sizes = [8, 1], strides = [1, 1]} : vector<8x3xf32> to vector<8x1xf32>
    %56 = vector.broadcast %53 : vector<8x1xf32> to vector<8x128xf32>
    %57 = arith.subf %56, %12 : vector<8x128xf32>
    %58 = arith.mulf %57, %57 : vector<8x128xf32>
    %59 = vector.broadcast %54 : vector<8x1xf32> to vector<8x128xf32>
    %60 = arith.subf %59, %15 : vector<8x128xf32>
    %61 = arith.mulf %60, %60 : vector<8x128xf32>
    %62 = arith.addf %58, %61 : vector<8x128xf32>
    %63 = vector.broadcast %55 : vector<8x1xf32> to vector<8x128xf32>
    %64 = arith.subf %63, %18 : vector<8x128xf32>
    %65 = arith.mulf %64, %64 : vector<8x128xf32>
    %66 = arith.addf %62, %65 : vector<8x128xf32>
    %67 = arith.cmpf olt, %66, %39 : vector<8x128xf32>
    %68 = arith.select %67, %66, %39 : vector<8x128xi1>, vector<8x128xf32>
    %c8_i32 = arith.constant 8 : i32
    %69 = vector.broadcast %c8_i32 : i32 to vector<8x128xi32>
    %70 = arith.addi %22, %69 : vector<8x128xi32>
    %71 = arith.select %67, %70, %42 : vector<8x128xi1>, vector<8x128xi32>
    %72 = vector.shape_cast %53 : vector<8x1xf32> to vector<8x1xf32>
    %73 = vector.broadcast %72 : vector<8x1xf32> to vector<8x128xf32>
    %74 = arith.select %67, %73, %45 : vector<8x128xi1>, vector<8x128xf32>
    %75 = vector.shape_cast %54 : vector<8x1xf32> to vector<8x1xf32>
    %76 = vector.broadcast %75 : vector<8x1xf32> to vector<8x128xf32>
    %77 = arith.select %67, %76, %48 : vector<8x128xi1>, vector<8x128xf32>
    %78 = vector.shape_cast %55 : vector<8x1xf32> to vector<8x1xf32>
    %79 = vector.broadcast %78 : vector<8x1xf32> to vector<8x128xf32>
    %80 = arith.select %67, %79, %51 : vector<8x128xi1>, vector<8x128xf32>
    %81 = vector.extract_strided_slice %1 {offsets = [16, 0], sizes = [8, 3], strides = [1, 1]} : vector<64x3xf32> to vector<8x3xf32>
    %82 = vector.extract_strided_slice %81 {offsets = [0, 0], sizes = [8, 1], strides = [1, 1]} : vector<8x3xf32> to vector<8x1xf32>
    %83 = vector.extract_strided_slice %81 {offsets = [0, 1], sizes = [8, 1], strides = [1, 1]} : vector<8x3xf32> to vector<8x1xf32>
    %84 = vector.extract_strided_slice %81 {offsets = [0, 2], sizes = [8, 1], strides = [1, 1]} : vector<8x3xf32> to vector<8x1xf32>
    %85 = vector.broadcast %82 : vector<8x1xf32> to vector<8x128xf32>
    %86 = arith.subf %85, %12 : vector<8x128xf32>
    %87 = arith.mulf %86, %86 : vector<8x128xf32>
    %88 = vector.broadcast %83 : vector<8x1xf32> to vector<8x128xf32>
    %89 = arith.subf %88, %15 : vector<8x128xf32>
    %90 = arith.mulf %89, %89 : vector<8x128xf32>
    %91 = arith.addf %87, %90 : vector<8x128xf32>
    %92 = vector.broadcast %84 : vector<8x1xf32> to vector<8x128xf32>
    %93 = arith.subf %92, %18 : vector<8x128xf32>
    %94 = arith.mulf %93, %93 : vector<8x128xf32>
    %95 = arith.addf %91, %94 : vector<8x128xf32>
    %96 = arith.cmpf olt, %95, %68 : vector<8x128xf32>
    %97 = arith.select %96, %95, %68 : vector<8x128xi1>, vector<8x128xf32>
    %c16_i32 = arith.constant 16 : i32
    %98 = vector.broadcast %c16_i32 : i32 to vector<8x128xi32>
    %99 = arith.addi %22, %98 : vector<8x128xi32>
    %100 = arith.select %96, %99, %71 : vector<8x128xi1>, vector<8x128xi32>
    %101 = vector.shape_cast %82 : vector<8x1xf32> to vector<8x1xf32>
    %102 = vector.broadcast %101 : vector<8x1xf32> to vector<8x128xf32>
    %103 = arith.select %96, %102, %74 : vector<8x128xi1>, vector<8x128xf32>
    %104 = vector.shape_cast %83 : vector<8x1xf32> to vector<8x1xf32>
    %105 = vector.broadcast %104 : vector<8x1xf32> to vector<8x128xf32>
    %106 = arith.select %96, %105, %77 : vector<8x128xi1>, vector<8x128xf32>
    %107 = vector.shape_cast %84 : vector<8x1xf32> to vector<8x1xf32>
    %108 = vector.broadcast %107 : vector<8x1xf32> to vector<8x128xf32>
    %109 = arith.select %96, %108, %80 : vector<8x128xi1>, vector<8x128xf32>
    %110 = vector.extract_strided_slice %1 {offsets = [24, 0], sizes = [8, 3], strides = [1, 1]} : vector<64x3xf32> to vector<8x3xf32>
    %111 = vector.extract_strided_slice %110 {offsets = [0, 0], sizes = [8, 1], strides = [1, 1]} : vector<8x3xf32> to vector<8x1xf32>
    %112 = vector.extract_strided_slice %110 {offsets = [0, 1], sizes = [8, 1], strides = [1, 1]} : vector<8x3xf32> to vector<8x1xf32>
    %113 = vector.extract_strided_slice %110 {offsets = [0, 2], sizes = [8, 1], strides = [1, 1]} : vector<8x3xf32> to vector<8x1xf32>
    %114 = vector.broadcast %111 : vector<8x1xf32> to vector<8x128xf32>
    %115 = arith.subf %114, %12 : vector<8x128xf32>
    %116 = arith.mulf %115, %115 : vector<8x128xf32>
    %117 = vector.broadcast %112 : vector<8x1xf32> to vector<8x128xf32>
    %118 = arith.subf %117, %15 : vector<8x128xf32>
    %119 = arith.mulf %118, %118 : vector<8x128xf32>
    %120 = arith.addf %116, %119 : vector<8x128xf32>
    %121 = vector.broadcast %113 : vector<8x1xf32> to vector<8x128xf32>
    %122 = arith.subf %121, %18 : vector<8x128xf32>
    %123 = arith.mulf %122, %122 : vector<8x128xf32>
    %124 = arith.addf %120, %123 : vector<8x128xf32>
    %125 = arith.cmpf olt, %124, %97 : vector<8x128xf32>
    %126 = arith.select %125, %124, %97 : vector<8x128xi1>, vector<8x128xf32>
    %c24_i32 = arith.constant 24 : i32
    %127 = vector.broadcast %c24_i32 : i32 to vector<8x128xi32>
    %128 = arith.addi %22, %127 : vector<8x128xi32>
    %129 = arith.select %125, %128, %100 : vector<8x128xi1>, vector<8x128xi32>
    %130 = vector.shape_cast %111 : vector<8x1xf32> to vector<8x1xf32>
    %131 = vector.broadcast %130 : vector<8x1xf32> to vector<8x128xf32>
    %132 = arith.select %125, %131, %103 : vector<8x128xi1>, vector<8x128xf32>
    %133 = vector.shape_cast %112 : vector<8x1xf32> to vector<8x1xf32>
    %134 = vector.broadcast %133 : vector<8x1xf32> to vector<8x128xf32>
    %135 = arith.select %125, %134, %106 : vector<8x128xi1>, vector<8x128xf32>
    %136 = vector.shape_cast %113 : vector<8x1xf32> to vector<8x1xf32>
    %137 = vector.broadcast %136 : vector<8x1xf32> to vector<8x128xf32>
    %138 = arith.select %125, %137, %109 : vector<8x128xi1>, vector<8x128xf32>
    %139 = vector.extract_strided_slice %1 {offsets = [32, 0], sizes = [8, 3], strides = [1, 1]} : vector<64x3xf32> to vector<8x3xf32>
    %140 = vector.extract_strided_slice %139 {offsets = [0, 0], sizes = [8, 1], strides = [1, 1]} : vector<8x3xf32> to vector<8x1xf32>
    %141 = vector.extract_strided_slice %139 {offsets = [0, 1], sizes = [8, 1], strides = [1, 1]} : vector<8x3xf32> to vector<8x1xf32>
    %142 = vector.extract_strided_slice %139 {offsets = [0, 2], sizes = [8, 1], strides = [1, 1]} : vector<8x3xf32> to vector<8x1xf32>
    %143 = vector.broadcast %140 : vector<8x1xf32> to vector<8x128xf32>
    %144 = arith.subf %143, %12 : vector<8x128xf32>
    %145 = arith.mulf %144, %144 : vector<8x128xf32>
    %146 = vector.broadcast %141 : vector<8x1xf32> to vector<8x128xf32>
    %147 = arith.subf %146, %15 : vector<8x128xf32>
    %148 = arith.mulf %147, %147 : vector<8x128xf32>
    %149 = arith.addf %145, %148 : vector<8x128xf32>
    %150 = vector.broadcast %142 : vector<8x1xf32> to vector<8x128xf32>
    %151 = arith.subf %150, %18 : vector<8x128xf32>
    %152 = arith.mulf %151, %151 : vector<8x128xf32>
    %153 = arith.addf %149, %152 : vector<8x128xf32>
    %154 = arith.cmpf olt, %153, %126 : vector<8x128xf32>
    %155 = arith.select %154, %153, %126 : vector<8x128xi1>, vector<8x128xf32>
    %c32_i32 = arith.constant 32 : i32
    %156 = vector.broadcast %c32_i32 : i32 to vector<8x128xi32>
    %157 = arith.addi %22, %156 : vector<8x128xi32>
    %158 = arith.select %154, %157, %129 : vector<8x128xi1>, vector<8x128xi32>
    %159 = vector.shape_cast %140 : vector<8x1xf32> to vector<8x1xf32>
    %160 = vector.broadcast %159 : vector<8x1xf32> to vector<8x128xf32>
    %161 = arith.select %154, %160, %132 : vector<8x128xi1>, vector<8x128xf32>
    %162 = vector.shape_cast %141 : vector<8x1xf32> to vector<8x1xf32>
    %163 = vector.broadcast %162 : vector<8x1xf32> to vector<8x128xf32>
    %164 = arith.select %154, %163, %135 : vector<8x128xi1>, vector<8x128xf32>
    %165 = vector.shape_cast %142 : vector<8x1xf32> to vector<8x1xf32>
    %166 = vector.broadcast %165 : vector<8x1xf32> to vector<8x128xf32>
    %167 = arith.select %154, %166, %138 : vector<8x128xi1>, vector<8x128xf32>
    %168 = vector.extract_strided_slice %1 {offsets = [40, 0], sizes = [8, 3], strides = [1, 1]} : vector<64x3xf32> to vector<8x3xf32>
    %169 = vector.extract_strided_slice %168 {offsets = [0, 0], sizes = [8, 1], strides = [1, 1]} : vector<8x3xf32> to vector<8x1xf32>
    %170 = vector.extract_strided_slice %168 {offsets = [0, 1], sizes = [8, 1], strides = [1, 1]} : vector<8x3xf32> to vector<8x1xf32>
    %171 = vector.extract_strided_slice %168 {offsets = [0, 2], sizes = [8, 1], strides = [1, 1]} : vector<8x3xf32> to vector<8x1xf32>
    %172 = vector.broadcast %169 : vector<8x1xf32> to vector<8x128xf32>
    %173 = arith.subf %172, %12 : vector<8x128xf32>
    %174 = arith.mulf %173, %173 : vector<8x128xf32>
    %175 = vector.broadcast %170 : vector<8x1xf32> to vector<8x128xf32>
    %176 = arith.subf %175, %15 : vector<8x128xf32>
    %177 = arith.mulf %176, %176 : vector<8x128xf32>
    %178 = arith.addf %174, %177 : vector<8x128xf32>
    %179 = vector.broadcast %171 : vector<8x1xf32> to vector<8x128xf32>
    %180 = arith.subf %179, %18 : vector<8x128xf32>
    %181 = arith.mulf %180, %180 : vector<8x128xf32>
    %182 = arith.addf %178, %181 : vector<8x128xf32>
    %183 = arith.cmpf olt, %182, %155 : vector<8x128xf32>
    %184 = arith.select %183, %182, %155 : vector<8x128xi1>, vector<8x128xf32>
    %c40_i32 = arith.constant 40 : i32
    %185 = vector.broadcast %c40_i32 : i32 to vector<8x128xi32>
    %186 = arith.addi %22, %185 : vector<8x128xi32>
    %187 = arith.select %183, %186, %158 : vector<8x128xi1>, vector<8x128xi32>
    %188 = vector.shape_cast %169 : vector<8x1xf32> to vector<8x1xf32>
    %189 = vector.broadcast %188 : vector<8x1xf32> to vector<8x128xf32>
    %190 = arith.select %183, %189, %161 : vector<8x128xi1>, vector<8x128xf32>
    %191 = vector.shape_cast %170 : vector<8x1xf32> to vector<8x1xf32>
    %192 = vector.broadcast %191 : vector<8x1xf32> to vector<8x128xf32>
    %193 = arith.select %183, %192, %164 : vector<8x128xi1>, vector<8x128xf32>
    %194 = vector.shape_cast %171 : vector<8x1xf32> to vector<8x1xf32>
    %195 = vector.broadcast %194 : vector<8x1xf32> to vector<8x128xf32>
    %196 = arith.select %183, %195, %167 : vector<8x128xi1>, vector<8x128xf32>
    %197 = vector.extract_strided_slice %1 {offsets = [48, 0], sizes = [8, 3], strides = [1, 1]} : vector<64x3xf32> to vector<8x3xf32>
    %198 = vector.extract_strided_slice %197 {offsets = [0, 0], sizes = [8, 1], strides = [1, 1]} : vector<8x3xf32> to vector<8x1xf32>
    %199 = vector.extract_strided_slice %197 {offsets = [0, 1], sizes = [8, 1], strides = [1, 1]} : vector<8x3xf32> to vector<8x1xf32>
    %200 = vector.extract_strided_slice %197 {offsets = [0, 2], sizes = [8, 1], strides = [1, 1]} : vector<8x3xf32> to vector<8x1xf32>
    %201 = vector.broadcast %198 : vector<8x1xf32> to vector<8x128xf32>
    %202 = arith.subf %201, %12 : vector<8x128xf32>
    %203 = arith.mulf %202, %202 : vector<8x128xf32>
    %204 = vector.broadcast %199 : vector<8x1xf32> to vector<8x128xf32>
    %205 = arith.subf %204, %15 : vector<8x128xf32>
    %206 = arith.mulf %205, %205 : vector<8x128xf32>
    %207 = arith.addf %203, %206 : vector<8x128xf32>
    %208 = vector.broadcast %200 : vector<8x1xf32> to vector<8x128xf32>
    %209 = arith.subf %208, %18 : vector<8x128xf32>
    %210 = arith.mulf %209, %209 : vector<8x128xf32>
    %211 = arith.addf %207, %210 : vector<8x128xf32>
    %212 = arith.cmpf olt, %211, %184 : vector<8x128xf32>
    %213 = arith.select %212, %211, %184 : vector<8x128xi1>, vector<8x128xf32>
    %c48_i32 = arith.constant 48 : i32
    %214 = vector.broadcast %c48_i32 : i32 to vector<8x128xi32>
    %215 = arith.addi %22, %214 : vector<8x128xi32>
    %216 = arith.select %212, %215, %187 : vector<8x128xi1>, vector<8x128xi32>
    %217 = vector.shape_cast %198 : vector<8x1xf32> to vector<8x1xf32>
    %218 = vector.broadcast %217 : vector<8x1xf32> to vector<8x128xf32>
    %219 = arith.select %212, %218, %190 : vector<8x128xi1>, vector<8x128xf32>
    %220 = vector.shape_cast %199 : vector<8x1xf32> to vector<8x1xf32>
    %221 = vector.broadcast %220 : vector<8x1xf32> to vector<8x128xf32>
    %222 = arith.select %212, %221, %193 : vector<8x128xi1>, vector<8x128xf32>
    %223 = vector.shape_cast %200 : vector<8x1xf32> to vector<8x1xf32>
    %224 = vector.broadcast %223 : vector<8x1xf32> to vector<8x128xf32>
    %225 = arith.select %212, %224, %196 : vector<8x128xi1>, vector<8x128xf32>
    %226 = vector.extract_strided_slice %1 {offsets = [56, 0], sizes = [8, 3], strides = [1, 1]} : vector<64x3xf32> to vector<8x3xf32>
    %227 = vector.extract_strided_slice %226 {offsets = [0, 0], sizes = [8, 1], strides = [1, 1]} : vector<8x3xf32> to vector<8x1xf32>
    %228 = vector.extract_strided_slice %226 {offsets = [0, 1], sizes = [8, 1], strides = [1, 1]} : vector<8x3xf32> to vector<8x1xf32>
    %229 = vector.extract_strided_slice %226 {offsets = [0, 2], sizes = [8, 1], strides = [1, 1]} : vector<8x3xf32> to vector<8x1xf32>
    %230 = vector.broadcast %227 : vector<8x1xf32> to vector<8x128xf32>
    %231 = arith.subf %230, %12 : vector<8x128xf32>
    %232 = arith.mulf %231, %231 : vector<8x128xf32>
    %233 = vector.broadcast %228 : vector<8x1xf32> to vector<8x128xf32>
    %234 = arith.subf %233, %15 : vector<8x128xf32>
    %235 = arith.mulf %234, %234 : vector<8x128xf32>
    %236 = arith.addf %232, %235 : vector<8x128xf32>
    %237 = vector.broadcast %229 : vector<8x1xf32> to vector<8x128xf32>
    %238 = arith.subf %237, %18 : vector<8x128xf32>
    %239 = arith.mulf %238, %238 : vector<8x128xf32>
    %240 = arith.addf %236, %239 : vector<8x128xf32>
    %241 = arith.cmpf olt, %240, %213 : vector<8x128xf32>
    %242 = arith.select %241, %240, %213 : vector<8x128xi1>, vector<8x128xf32>
    %c56_i32 = arith.constant 56 : i32
    %243 = vector.broadcast %c56_i32 : i32 to vector<8x128xi32>
    %244 = arith.addi %22, %243 : vector<8x128xi32>
    %245 = arith.select %241, %244, %216 : vector<8x128xi1>, vector<8x128xi32>
    %246 = vector.shape_cast %227 : vector<8x1xf32> to vector<8x1xf32>
    %247 = vector.broadcast %246 : vector<8x1xf32> to vector<8x128xf32>
    %248 = arith.select %241, %247, %219 : vector<8x128xi1>, vector<8x128xf32>
    %249 = vector.shape_cast %228 : vector<8x1xf32> to vector<8x1xf32>
    %250 = vector.broadcast %249 : vector<8x1xf32> to vector<8x128xf32>
    %251 = arith.select %241, %250, %222 : vector<8x128xi1>, vector<8x128xf32>
    %252 = vector.shape_cast %229 : vector<8x1xf32> to vector<8x1xf32>
    %253 = vector.broadcast %252 : vector<8x1xf32> to vector<8x128xf32>
    %254 = arith.select %241, %253, %225 : vector<8x128xi1>, vector<8x128xf32>
    %c0_15 = arith.constant 0 : index
    %c0_16 = arith.constant 0 : index
    %255 = vector.load %arg7[%c0_15, %c0_16] : memref<8x128xf32, #tpu.memory_space<vmem>>, vector<8x128xf32>
    tpu.vector_store %arg7[%c0_15, %c0_16], %242 {strides = array<i32>} : memref<8x128xf32, #tpu.memory_space<vmem>>, vector<8x128xf32>,
    %c0_17 = arith.constant 0 : index
    %c0_18 = arith.constant 0 : index
    %256 = vector.load %arg8[%c0_17, %c0_18] : memref<8x128xi32, #tpu.memory_space<vmem>>, vector<8x128xi32>
    tpu.vector_store %arg8[%c0_17, %c0_18], %245 {strides = array<i32>} : memref<8x128xi32, #tpu.memory_space<vmem>>, vector<8x128xi32>,
    %c0_19 = arith.constant 0 : index
    %c0_20 = arith.constant 0 : index
    %257 = vector.load %arg9[%c0_19, %c0_20] : memref<8x128xf32, #tpu.memory_space<vmem>>, vector<8x128xf32>
    tpu.vector_store %arg9[%c0_19, %c0_20], %248 {strides = array<i32>} : memref<8x128xf32, #tpu.memory_space<vmem>>, vector<8x128xf32>,
    %c0_21 = arith.constant 0 : index
    %c0_22 = arith.constant 0 : index
    %258 = vector.load %arg10[%c0_21, %c0_22] : memref<8x128xf32, #tpu.memory_space<vmem>>, vector<8x128xf32>
    tpu.vector_store %arg10[%c0_21, %c0_22], %251 {strides = array<i32>} : memref<8x128xf32, #tpu.memory_space<vmem>>, vector<8x128xf32>,
    %c0_23 = arith.constant 0 : index
    %c0_24 = arith.constant 0 : index
    %259 = vector.load %arg11[%c0_23, %c0_24] : memref<8x128xf32, #tpu.memory_space<vmem>>, vector<8x128xf32>
    tpu.vector_store %arg11[%c0_23, %c0_24], %254 {strides = array<i32>} : memref<8x128xf32, #tpu.memory_space<vmem>>, vector<8x128xf32>,
    %c0_i32_25 = arith.constant 0 : i32
    %260 = arith.cmpi eq, %arg1, %c0_i32_25 : i32
    %261 = arith.extui %260 : i1 to i32
    %c0_i32_26 = arith.constant 0 : i32
    %262 = arith.cmpi ne, %261, %c0_i32_26 : i32
    scf.if %262 {
      %cst = arith.constant dense<0x7F800000> : vector<128xf32>
      %263 = vector.multi_reduction <minimumf>, %242, %cst [0] : vector<8x128xf32> to vector<128xf32>
      %264 = vector.shape_cast %263 : vector<128xf32> to vector<1x128xf32>
      %265 = vector.broadcast %264 : vector<1x128xf32> to vector<8x128xf32>
      %266 = arith.cmpf oeq, %242, %265 : vector<8x128xf32>
      %c64_i32_27 = arith.constant 64 : i32
      %267 = vector.broadcast %c64_i32_27 : i32 to vector<8x128xi32>
      %268 = arith.select %266, %245, %267 : vector<8x128xi1>, vector<8x128xi32>
      %cst_28 = arith.constant dense<2147483647> : vector<128xi32>
      %269 = vector.multi_reduction <minsi>, %268, %cst_28 [0] : vector<8x128xi32> to vector<128xi32>
      %270 = vector.shape_cast %269 : vector<128xi32> to vector<1x128xi32>
      %271 = vector.broadcast %270 : vector<1x128xi32> to vector<8x128xi32>
      %272 = arith.cmpi eq, %245, %271 : vector<8x128xi32>
      %cst_29 = arith.constant 0.000000e+00 : f32
      %273 = vector.broadcast %cst_29 : f32 to vector<8x128xf32>
      %274 = arith.select %272, %248, %273 : vector<8x128xi1>, vector<8x128xf32>
      %cst_30 = arith.constant dense<0.000000e+00> : vector<128xf32>
      %275 = vector.multi_reduction <add>, %274, %cst_30 [0] : vector<8x128xf32> to vector<128xf32>
      %276 = vector.shape_cast %275 : vector<128xf32> to vector<1x128xf32>
      %cst_31 = arith.constant 0.000000e+00 : f32
      %277 = vector.broadcast %cst_31 : f32 to vector<8x128xf32>
      %278 = arith.select %272, %251, %277 : vector<8x128xi1>, vector<8x128xf32>
      %cst_32 = arith.constant dense<0.000000e+00> : vector<128xf32>
      %279 = vector.multi_reduction <add>, %278, %cst_32 [0] : vector<8x128xf32> to vector<128xf32>
      %280 = vector.shape_cast %279 : vector<128xf32> to vector<1x128xf32>
      %cst_33 = arith.constant 0.000000e+00 : f32
      %281 = vector.broadcast %cst_33 : f32 to vector<8x128xf32>
      %282 = arith.select %272, %254, %281 : vector<8x128xi1>, vector<8x128xf32>
      %cst_34 = arith.constant dense<0.000000e+00> : vector<128xf32>
      %283 = vector.multi_reduction <add>, %282, %cst_34 [0] : vector<8x128xf32> to vector<128xf32>
      %284 = vector.shape_cast %283 : vector<128xf32> to vector<1x128xf32>
      %c0_35 = arith.constant 0 : index
      %c0_36 = arith.constant 0 : index
      %285 = vector.load %arg4[%c0_35, %c0_36] : memref<1x128xf32, #tpu.memory_space<vmem>>, vector<1x128xf32>
      tpu.vector_store %arg4[%c0_35, %c0_36], %264 {strides = array<i32>} : memref<1x128xf32, #tpu.memory_space<vmem>>, vector<1x128xf32>,
      %c0_37 = arith.constant 0 : index
      %c0_38 = arith.constant 0 : index
      %286 = vector.load %arg5[%c0_37, %c0_38] : memref<1x128xi32, #tpu.memory_space<vmem>>, vector<1x128xi32>
      tpu.vector_store %arg5[%c0_37, %c0_38], %270 {strides = array<i32>} : memref<1x128xi32, #tpu.memory_space<vmem>>, vector<1x128xi32>,
      %287 = tpu.concatenate %276, %280, %284 in 0 : vector<1x128xf32>, vector<1x128xf32>, vector<1x128xf32> -> vector<3x128xf32>
      %c0_39 = arith.constant 0 : index
      %c0_40 = arith.constant 0 : index
      %288 = vector.load %arg6[%c0_39, %c0_40] : memref<3x128xf32, #tpu.memory_space<vmem>>, vector<3x128xf32>
      tpu.vector_store %arg6[%c0_39, %c0_40], %287 {strides = array<i32>} : memref<3x128xf32, #tpu.memory_space<vmem>>, vector<3x128xf32>,
    } else {
    }
    return
  }
  func.func @transform_0(%arg0: i32, %arg1: i32) -> (i32, i32) {
    %c0_i32 = arith.constant 0 : i32
    %c0_i32_0 = arith.constant 0 : i32
    return %c0_i32, %arg0 : i32, i32
  }
  func.func @transform_1(%arg0: i32, %arg1: i32) -> (i32, i32) {
    %c0_i32 = arith.constant 0 : i32
    %c0_i32_0 = arith.constant 0 : i32
    return %arg1, %c0_i32 : i32, i32
  }
  func.func @transform_2(%arg0: i32, %arg1: i32) -> (i32, i32) {
    %c0_i32 = arith.constant 0 : i32
    %c0_i32_0 = arith.constant 0 : i32
    return %c0_i32, %arg0 : i32, i32
  }
  func.func @transform_3(%arg0: i32, %arg1: i32) -> (i32, i32) {
    %c0_i32 = arith.constant 0 : i32
    %c0_i32_0 = arith.constant 0 : i32
    return %c0_i32, %arg0 : i32, i32
  }
  func.func @transform_4(%arg0: i32, %arg1: i32) -> (i32, i32) {
    %c0_i32 = arith.constant 0 : i32
    %c0_i32_0 = arith.constant 0 : i32
    return %c0_i32, %arg0 : i32, i32
  }
}

</mosaic_0001>

<llo_original>
// kernel: tpu_custom_call.1
$region0: #{tpu_custom_call.1}
  #allocation0 [shape = 'u32[]', space=smem, size = 0x4, offset = 0x4, fixed_abs, tag = 'smem constant byte address 0x4 - core index']
  #allocation1 [shape = 'u32[144,128]{1,0:T(1,128)}', space=vmem, size = 0x12000, scoped, tag = 'internal scratch']
  #allocation2 [shape = 'f32[8,128]{1,0:T(8,128)}', space=vmem, size = 0x1000, scoped, tag = 'scratch operand']
  #allocation3 [shape = 's32[8,128]{1,0:T(8,128)}', space=vmem, size = 0x1000, scoped, tag = 'scratch operand']
  #allocation4 [shape = 'f32[8,128]{1,0:T(8,128)}', space=vmem, size = 0x1000, scoped, tag = 'scratch operand']
  #allocation5 [shape = 'f32[8,128]{1,0:T(8,128)}', space=vmem, size = 0x1000, scoped, tag = 'scratch operand']
  #allocation6 [shape = 'f32[8,128]{1,0:T(8,128)}', space=vmem, size = 0x1000, scoped, tag = 'scratch operand']
  %s0 = inlined_call_operand.vmem [shape: f32[3,128], index: 0, kind: input, shape index: {}]
  %s1 = inlined_call_operand.vmem [shape: f32[64,3], index: 1, kind: input, shape index: {}]
  %s2 = inlined_call_operand.hbm [shape: f32[1,128], index: 2, kind: output, shape index: {0}]
  %s3 = inlined_call_operand.hbm [shape: s32[1,128], index: 3, kind: output, shape index: {1}]
  %s4 = inlined_call_operand.hbm [shape: f32[3,128], index: 4, kind: output, shape index: {2}]
  %5 = xla_tuple %s2, %s3, %s4
  %s6 = sld [smem:[#allocation0]]
  $region42: #{tpu_custom_call.1} parent=0
    _
  %s8 = ssub.s32 1, %s6
  %s9 = scalar_select 0, %s8, %s6
  $region1: #{tpu_custom_call.1} parent=0
    #allocation7 [shape = 'u8[512]{0}', space=vmem, size = 0x400, scoped, tag = 'output window, operand 0, single buffered']
    #allocation8 [shape = 's32[1]{0}', space=sflag, size = 0x4, scoped, tag = 'scoped memory for tpu_custom_call.1']
    #allocation9 [shape = 'u8[512]{0}', space=vmem, size = 0x400, scoped, tag = 'output window, operand 1, single buffered']
    #allocation10 [shape = 's32[1]{0}', space=sflag, size = 0x4, scoped, tag = 'scoped memory for tpu_custom_call.1']
    #allocation11 [shape = 'u8[2048]{0}', space=vmem, size = 0x800, scoped, tag = 'output window, operand 2, single buffered']
    %10 = vsyncpa [#allocation8], 0
    %11 = vsyncpa [#allocation10], 0
    // Predicated region
    $region2: #{tpu_custom_call.1} parent=1 // pred_check
      _
    $region3: #{tpu_custom_call.1} parent=1 // pred_check_branch
      %13 = sbr.rel (0) target = $region5
    $region4: #{tpu_custom_call.1} parent=1 // pred_region
      _
    $region5: #{tpu_custom_call.1} parent=1 // pred_fallthru
      _
    // Predicated region
    $region6: #{tpu_custom_call.1} parent=1 // pred_check
      _
    $region7: #{tpu_custom_call.1} parent=1 // pred_check_branch
      %15 = sbr.rel (0) target = $region9
    $region8: #{tpu_custom_call.1} parent=1 // pred_region
      _
    $region9: #{tpu_custom_call.1} parent=1 // pred_fallthru
      _
    %v16 = vld [vmem:[%s0] sm:$0x7]
    %v17 = vld [vmem:[%s1] sm:$0xff]
    %v18 = vld [vmem:[%s1 + $0x8] sm:$0xff]
    %v19 = vld [vmem:[%s1 + $0x10] sm:$0xff]
    %v20 = vld [vmem:[%s1 + $0x18] sm:$0xff]
    %v21 = vld [vmem:[%s1 + $0x20] sm:$0xff]
    %v22 = vld [vmem:[%s1 + $0x28] sm:$0xff]
    %v23 = vld [vmem:[%s1 + $0x30] sm:$0xff]
    %v24 = vld [vmem:[%s1 + $0x38] sm:$0xff]
    %p25 = scmp.eq.s32.totalorder 0, 0
    // Predicated region
    $region10: #{tpu_custom_call.1} parent=1 // pred_check
      %p26 = pneg %p25
    $region11: #{tpu_custom_call.1} parent=1 // pred_check_branch
      %28 = sbr.rel (%p26) target = $region13
    $region12: #{tpu_custom_call.1} parent=1 // pred_region
      %29 = vst [vmem:[#allocation2] sm:$0xff] inf
      %30 = vst [vmem:[#allocation3] sm:$0xff] 0
      %31 = vst [vmem:[#allocation4] sm:$0xff] 0.0
      %32 = vst [vmem:[#allocation5] sm:$0xff] 0.0
      %33 = vst [vmem:[#allocation6] sm:$0xff] 0.0
    $region13: #{tpu_custom_call.1} parent=1 // pred_fallthru
      _
    %v34 = vld [vmem:[#allocation2] sm:$0xff]
    %v35 = vld [vmem:[#allocation3] sm:$0xff]
    %v36 = vld [vmem:[#allocation4] sm:$0xff]
    %v37 = vld [vmem:[#allocation5] sm:$0xff]
    %v38 = vld [vmem:[#allocation6] sm:$0xff]
    %v39 = vlaneseq
    %v40 = vshrl.u32 %v39, 7
    %v41 = vsub.s32 0, %v40
    %v42 = vrot.slane %v16, %v41
    %v43 = vlaneseq
    %v44 = vshrl.u32 %v43, 7
    %v45 = vsub.s32 1, %v44
    %v46 = vrot.slane %v16, %v45
    %v47 = vlaneseq
    %v48 = vshrl.u32 %v47, 7
    %v49 = vsub.s32 2, %v48
    %v50 = vrot.slane %v16, %v49
    %v51 = vlaneseq
    %v52 = vshrl.u32 %v51, 7
    %s53 = smul.u32 0, 64
    %v54 = vstv %s53
    %v55 = vadd.s32 %v52, %v54
    %57 = vset.pattern.permute.xlu0 0
    %58 = vperm.xlu0 %57, %v17
    %v59 = vpop.permute.xlu0 %58
    %v61 = vsub.f32 %v59, %v42
    %v62 = vmul.f32 %v61, %v61
    %63 = vset.pattern.permute.xlu0 1
    %64 = vperm.xlu0 %63, %v17
    %v65 = vpop.permute.xlu0 %64
    %v67 = vsub.f32 %v65, %v46
    %v68 = vmul.f32 %v67, %v67
    %v69 = vadd.f32 %v62, %v68
    %70 = vset.pattern.permute.xlu0 2
    %71 = vperm.xlu0 %70, %v17
    %v72 = vpop.permute.xlu0 %71
    %v74 = vsub.f32 %v72, %v50
    %v75 = vmul.f32 %v74, %v74
    %v76 = vadd.f32 %v69, %v75
    %vm77 = vcmp.lt.f32.partialorder %v76, %v34
    %v78 = vsel %vm77, %v76, %v34
    %v79 = vsel %vm77, %v55, %v35
    %v80 = vsel %vm77, %v59, %v36
    %v81 = vsel %vm77, %v65, %v37
    %v82 = vsel %vm77, %v72, %v38
    %84 = vset.pattern.permute.xlu0 0
    %85 = vperm.xlu0 %84, %v18
    %v86 = vpop.permute.xlu0 %85
    %v88 = vsub.f32 %v86, %v42
    %v89 = vmul.f32 %v88, %v88
    %90 = vset.pattern.permute.xlu0 1
    %91 = vperm.xlu0 %90, %v18
    %v92 = vpop.permute.xlu0 %91
    %v94 = vsub.f32 %v92, %v46
    %v95 = vmul.f32 %v94, %v94
    %v96 = vadd.f32 %v89, %v95
    %97 = vset.pattern.permute.xlu0 2
    %98 = vperm.xlu0 %97, %v18
    %v99 = vpop.permute.xlu0 %98
    %v101 = vsub.f32 %v99, %v50
    %v102 = vmul.f32 %v101, %v101
    %v103 = vadd.f32 %v96, %v102
    %vm104 = vcmp.lt.f32.partialorder %v103, %v78
    %v105 = vsel %vm104, %v103, %v78
    %v106 = vadd.s32 %v55, 8
    %v107 = vsel %vm104, %v106, %v79
    %v108 = vsel %vm104, %v86, %v80
    %v109 = vsel %vm104, %v92, %v81
    %v110 = vsel %vm104, %v99, %v82
    %112 = vset.pattern.permute.xlu0 0
    %113 = vperm.xlu0 %112, %v19
    %v114 = vpop.permute.xlu0 %113
    %v116 = vsub.f32 %v114, %v42
    %v117 = vmul.f32 %v116, %v116
    %118 = vset.pattern.permute.xlu0 1
    %119 = vperm.xlu0 %118, %v19
    %v120 = vpop.permute.xlu0 %119
    %v122 = vsub.f32 %v120, %v46
    %v123 = vmul.f32 %v122, %v122
    %v124 = vadd.f32 %v117, %v123
    %125 = vset.pattern.permute.xlu0 2
    %126 = vperm.xlu0 %125, %v19
    %v127 = vpop.permute.xlu0 %126
    %v129 = vsub.f32 %v127, %v50
    %v130 = vmul.f32 %v129, %v129
    %v131 = vadd.f32 %v124, %v130
    %vm132 = vcmp.lt.f32.partialorder %v131, %v105
    %v133 = vsel %vm132, %v131, %v105
    %v134 = vadd.s32 %v55, 16
    %v135 = vsel %vm132, %v134, %v107
    %v136 = vsel %vm132, %v114, %v108
    %v137 = vsel %vm132, %v120, %v109
    %v138 = vsel %vm132, %v127, %v110
    %140 = vset.pattern.permute.xlu0 0
    %141 = vperm.xlu0 %140, %v20
    %v142 = vpop.permute.xlu0 %141
    %v144 = vsub.f32 %v142, %v42
    %v145 = vmul.f32 %v144, %v144
    %146 = vset.pattern.permute.xlu0 1
    %147 = vperm.xlu0 %146, %v20
    %v148 = vpop.permute.xlu0 %147
    %v150 = vsub.f32 %v148, %v46
    %v151 = vmul.f32 %v150, %v150
    %v152 = vadd.f32 %v145, %v151
    %153 = vset.pattern.permute.xlu0 2
    %154 = vperm.xlu0 %153, %v20
    %v155 = vpop.permute.xlu0 %154
    %v157 = vsub.f32 %v155, %v50
    %v158 = vmul.f32 %v157, %v157
    %v159 = vadd.f32 %v152, %v158
    %vm160 = vcmp.lt.f32.partialorder %v159, %v133
    %v161 = vsel %vm160, %v159, %v133
    %v162 = vadd.s32 %v55, 24
    %v163 = vsel %vm160, %v162, %v135
    %v164 = vsel %vm160, %v142, %v136
    %v165 = vsel %vm160, %v148, %v137
    %v166 = vsel %vm160, %v155, %v138
    %168 = vset.pattern.permute.xlu0 0
    %169 = vperm.xlu0 %168, %v21
    %v170 = vpop.permute.xlu0 %169
    %v172 = vsub.f32 %v170, %v42
    %v173 = vmul.f32 %v172, %v172
    %174 = vset.pattern.permute.xlu0 1
    %175 = vperm.xlu0 %174, %v21
    %v176 = vpop.permute.xlu0 %175
    %v178 = vsub.f32 %v176, %v46
    %v179 = vmul.f32 %v178, %v178
    %v180 = vadd.f32 %v173, %v179
    %181 = vset.pattern.permute.xlu0 2
    %182 = vperm.xlu0 %181, %v21
    %v183 = vpop.permute.xlu0 %182
    %v185 = vsub.f32 %v183, %v50
    %v186 = vmul.f32 %v185, %v185
    %v187 = vadd.f32 %v180, %v186
    %vm188 = vcmp.lt.f32.partialorder %v187, %v161
    %v189 = vsel %vm188, %v187, %v161
    %v190 = vadd.s32 %v55, 32
    %v191 = vsel %vm188, %v190, %v163
    %v192 = vsel %vm188, %v170, %v164
    %v193 = vsel %vm188, %v176, %v165
    %v194 = vsel %vm188, %v183, %v166
    %196 = vset.pattern.permute.xlu0 0
    %197 = vperm.xlu0 %196, %v22
    %v198 = vpop.permute.xlu0 %197
    %v200 = vsub.f32 %v198, %v42
    %v201 = vmul.f32 %v200, %v200
    %202 = vset.pattern.permute.xlu0 1
    %203 = vperm.xlu0 %202, %v22
    %v204 = vpop.permute.xlu0 %203
    %v206 = vsub.f32 %v204, %v46
    %v207 = vmul.f32 %v206, %v206
    %v208 = vadd.f32 %v201, %v207
    %209 = vset.pattern.permute.xlu0 2
    %210 = vperm.xlu0 %209, %v22
    %v211 = vpop.permute.xlu0 %210
    %v213 = vsub.f32 %v211, %v50
    %v214 = vmul.f32 %v213, %v213
    %v215 = vadd.f32 %v208, %v214
    %vm216 = vcmp.lt.f32.partialorder %v215, %v189
    %v217 = vsel %vm216, %v215, %v189
    %v218 = vadd.s32 %v55, 40
    %v219 = vsel %vm216, %v218, %v191
    %v220 = vsel %vm216, %v198, %v192
    %v221 = vsel %vm216, %v204, %v193
    %v222 = vsel %vm216, %v211, %v194
    %224 = vset.pattern.permute.xlu0 0
    %225 = vperm.xlu0 %224, %v23
    %v226 = vpop.permute.xlu0 %225
    %v228 = vsub.f32 %v226, %v42
    %v229 = vmul.f32 %v228, %v228
    %230 = vset.pattern.permute.xlu0 1
    %231 = vperm.xlu0 %230, %v23
    %v232 = vpop.permute.xlu0 %231
    %v234 = vsub.f32 %v232, %v46
    %v235 = vmul.f32 %v234, %v234
    %v236 = vadd.f32 %v229, %v235
    %237 = vset.pattern.permute.xlu0 2
    %238 = vperm.xlu0 %237, %v23
    %v239 = vpop.permute.xlu0 %238
    %v241 = vsub.f32 %v239, %v50
    %v242 = vmul.f32 %v241, %v241
    %v243 = vadd.f32 %v236, %v242
    %vm244 = vcmp.lt.f32.partialorder %v243, %v217
    %v245 = vsel %vm244, %v243, %v217
    %v246 = vadd.s32 %v55, 48
    %v247 = vsel %vm244, %v246, %v219
    %v248 = vsel %vm244, %v226, %v220
    %v249 = vsel %vm244, %v232, %v221
    %v250 = vsel %vm244, %v239, %v222
    %252 = vset.pattern.permute.xlu0 0
    %253 = vperm.xlu0 %252, %v24
    %v254 = vpop.permute.xlu0 %253
    %v256 = vsub.f32 %v254, %v42
    %v257 = vmul.f32 %v256, %v256
    %258 = vset.pattern.permute.xlu0 1
    %259 = vperm.xlu0 %258, %v24
    %v260 = vpop.permute.xlu0 %259
    %v262 = vsub.f32 %v260, %v46
    %v263 = vmul.f32 %v262, %v262
    %v264 = vadd.f32 %v257, %v263
    %265 = vset.pattern.permute.xlu0 2
    %266 = vperm.xlu0 %265, %v24
    %v267 = vpop.permute.xlu0 %266
    %v269 = vsub.f32 %v267, %v50
    %v270 = vmul.f32 %v269, %v269
    %v271 = vadd.f32 %v264, %v270
    %vm272 = vcmp.lt.f32.partialorder %v271, %v245
    %v273 = vsel %vm272, %v271, %v245
    %v274 = vadd.s32 %v55, 56
    %v275 = vsel %vm272, %v274, %v247
    %v276 = vsel %vm272, %v254, %v248
    %v277 = vsel %vm272, %v260, %v249
    %v278 = vsel %vm272, %v267, %v250
    %279 = vst [vmem:[#allocation2] sm:$0xff] %v273
    %280 = vst [vmem:[#allocation3] sm:$0xff] %v275
    %281 = vst [vmem:[#allocation4] sm:$0xff] %v276
    %282 = vst [vmem:[#allocation5] sm:$0xff] %v277
    %283 = vst [vmem:[#allocation6] sm:$0xff] %v278
    // Predicated region
    $region14: #{tpu_custom_call.1} parent=1 // pred_check
      %p284 = pneg %p25
    $region15: #{tpu_custom_call.1} parent=1 // pred_check_branch
      %286 = sbr.rel (%p284) target = $region17
    $region16: #{tpu_custom_call.1} parent=1 // pred_region
      %v287 = vrot.slane %v273, 4
      %v288 = vmin.f32 %v273, %v287
      %v289 = vrot.slane %v288, 2
      %v290 = vmin.f32 %v288, %v289
      %v291 = vrot.slane %v290, 1
      %v292 = vmin.f32 %v290, %v291
      %vm293 = vcmp.eq.f32.partialorder %v273, %v292
      %v294 = vsel %vm293, %v275, 64
      %v295 = vrot.slane %v294, 4
      %vm296 = vcmp.lt.s32.totalorder %v294, %v295
      %v297 = vsel %vm296, %v294, %v295
      %v298 = vrot.slane %v297, 2
      %vm299 = vcmp.lt.s32.totalorder %v297, %v298
      %v300 = vsel %vm299, %v297, %v298
      %v301 = vrot.slane %v300, 1
      %vm302 = vcmp.lt.s32.totalorder %v300, %v301
      %v303 = vsel %vm302, %v300, %v301
      %vm304 = vcmp.eq.s32.totalorder %v275, %v303
      %v305 = vsel %vm304, %v276, 0.0
      %v306 = vrot.slane %v305, 4
      %v307 = vadd.f32 %v305, %v306
      %v308 = vrot.slane %v307, 2
      %v309 = vadd.f32 %v307, %v308
      %v310 = vrot.slane %v309, 1
      %v311 = vadd.f32 %v309, %v310
      %v312 = vsel %vm304, %v277, 0.0
      %v313 = vrot.slane %v312, 4
      %v314 = vadd.f32 %v312, %v313
      %v315 = vrot.slane %v314, 2
      %v316 = vadd.f32 %v314, %v315
      %v317 = vrot.slane %v316, 1
      %v318 = vadd.f32 %v316, %v317
      %v319 = vsel %vm304, %v278, 0.0
      %v320 = vrot.slane %v319, 4
      %v321 = vadd.f32 %v319, %v320
      %v322 = vrot.slane %v321, 2
      %v323 = vadd.f32 %v321, %v322
      %v324 = vrot.slane %v323, 1
      %v325 = vadd.f32 %v323, %v324
      %326 = vst [vmem:[#allocation7] sm:$0x1] %v292
      %327 = vst [vmem:[#allocation9] sm:$0x1] %v303
      %vm328 = vcmask 1040384
      %v329 = vsel %vm328, %v311, %v318
      %vm330 = vcmask 1041408
      %v331 = vsel %vm330, %v329, %v325
      %332 = vst [vmem:[#allocation11] sm:$0x7] %v331
    $region17: #{tpu_custom_call.1} parent=1 // pred_fallthru
      _
    // Predicated region
    $region18: #{tpu_custom_call.1} parent=1 // pred_check
      _
    $region19: #{tpu_custom_call.1} parent=1 // pred_check_branch
      %334 = sbr.rel (0) target = $region21
    $region20: #{tpu_custom_call.1} parent=1 // pred_region
      %s336 = ssub.s32 16, 16
      %337 = vsyncadd [#allocation8], %s336
      %s339 = sshll.u32 [#allocation7], 4
      %s340 = int_to_ptr.vmem [resolvable:$true] %s339
      %342 = dma.vmem_to_hbm [thread:$0]  %s340, 16, %s2, [#allocation8]
    $region21: #{tpu_custom_call.1} parent=1 // pred_fallthru
      _
    // Predicated region
    $region22: #{tpu_custom_call.1} parent=1 // pred_check
      _
    $region23: #{tpu_custom_call.1} parent=1 // pred_check_branch
      %344 = sbr.rel (0) target = $region25
    $region24: #{tpu_custom_call.1} parent=1 // pred_region
      %s346 = ssub.s32 16, 16
      %347 = vsyncadd [#allocation10], %s346
      %s349 = sshll.u32 [#allocation9], 4
      %s350 = int_to_ptr.vmem [resolvable:$true] %s349
      %352 = dma.vmem_to_hbm [thread:$0]  %s350, 16, %s3, [#allocation10]
    $region25: #{tpu_custom_call.1} parent=1 // pred_fallthru
      _
    // Predicated region
    $region26: #{tpu_custom_call.1} parent=1 // pred_check
      _
    $region27: #{tpu_custom_call.1} parent=1 // pred_check_branch
      %354 = sbr.rel (0) target = $region29
    $region28: #{tpu_custom_call.1} parent=1 // pred_region
      %s356 = ssub.s32 64, 64
      %357 = vsyncadd [#allocation10], %s356
      %s359 = sshll.u32 [#allocation11], 4
      %s360 = int_to_ptr.vmem [resolvable:$true] %s359
      %362 = dma.vmem_to_hbm [thread:$0]  %s360, 64, %s4, [#allocation10]
    $region29: #{tpu_custom_call.1} parent=1 // pred_fallthru
      _
    // Predicated region
    $region30: #{tpu_custom_call.1} parent=1 // pred_check
      _
    $region31: #{tpu_custom_call.1} parent=1 // pred_check_branch
      %364 = sbr.rel (0) target = $region33
    $region32: #{tpu_custom_call.1} parent=1 // pred_region
      %365 = dma.done [#allocation8], 16
    $region33: #{tpu_custom_call.1} parent=1 // pred_fallthru
      _
    // Predicated region
    $region34: #{tpu_custom_call.1} parent=1 // pred_check
      _
    $region35: #{tpu_custom_call.1} parent=1 // pred_check_branch
      %367 = sbr.rel (0) target = $region37
    $region36: #{tpu_custom_call.1} parent=1 // pred_region
      %368 = dma.done [#allocation10], 16
    $region37: #{tpu_custom_call.1} parent=1 // pred_fallthru
      _
    // Predicated region
    $region38: #{tpu_custom_call.1} parent=1 // pred_check
      _
    $region39: #{tpu_custom_call.1} parent=1 // pred_check_branch
      %370 = sbr.rel (0) target = $region41
    $region40: #{tpu_custom_call.1} parent=1 // pred_region
      %371 = dma.done [#allocation10], 64
    $region41: #{tpu_custom_call.1} parent=1 // pred_fallthru
      _
    %372 = vsyncpa [#allocation8], 1
    %373 = vsyncpa [#allocation10], 1

</llo_original>
